<compile_context>
chip_gen: v7x
topology: tpu7x:2x2x1
jax: 0.10.0
libtpu: 0.0.40
codegen_flags: <defaults>
</compile_context>

<pallas_src>
import functools

import numpy as np
import jax
import jax.numpy as jnp
from jax import lax
from jax.experimental import pallas as pl
from jax.experimental.pallas import tpu as pltpu


def _round_up(v, m):
    return (v + m - 1) // m * m


def _cdiv(a, b):
    return (a + b - 1) // b


# ----------------------------------------------------------------------------
# Static structure matrices derived from the irreps (list of (mul, l) pairs).
# ----------------------------------------------------------------------------
def build_structure(irreps, normalization):
    """rnorm : (D, F) squared feature cols -> per-irrep-instance norm (1/d or 1)
       bcast : (F, D) per-irrep-instance scale -> its d columns
       smask : (1, D) 1.0 on l==0 (scalar) columns
       scalar_cols : columns (in bias order) where the affine bias lands."""
    D = sum(mul * (2 * l + 1) for mul, l in irreps)
    F = sum(mul for mul, l in irreps)
    rnorm = np.zeros((D, F), np.float32)
    bcast = np.zeros((F, D), np.float32)
    smask = np.zeros((1, D), np.float32)
    scalar_cols = []
    ix = iw = 0
    for mul, l in irreps:
        d = 2 * l + 1
        for m in range(mul):
            for c in range(d):
                col = ix + m * d + c
                rnorm[col, iw + m] = (1.0 / d) if normalization == 'component' else 1.0
                bcast[iw + m, col] = 1.0
            if l == 0:
                smask[0, ix + m] = 1.0
                scalar_cols.append(ix + m)
        ix += mul * d
        iw += mul
    return rnorm, bcast, smask, np.asarray(scalar_cols, np.int64), D, F


# ----------------------------------------------------------------------------
# Pass 1: per-graph sums of x, x^2 and counts (per-core resident accumulators).
# ----------------------------------------------------------------------------
def _stats_kernel(x_ref, b_ref, cs_ref, sq_ref, cnt_ref):
    @pl.when(pl.program_id(1) == 0)
    def _():
        cs_ref[...] = jnp.zeros_like(cs_ref)
        sq_ref[...] = jnp.zeros_like(sq_ref)
        cnt_ref[...] = jnp.zeros_like(cnt_ref)

    x = x_ref[...].astype(jnp.float32)                 # (TN, D)
    bt = b_ref[...]                                    # (TN, 1) int32 graph ids
    tn = x.shape[0]
    g = cs_ref.shape[0]
    # One-hot built in-kernel; invalid ids (padded rows) give an all-zero row.
    oh = (lax.broadcasted_iota(jnp.int32, (tn, g), 1) == bt).astype(jnp.float32)

    dn = (((0,), (0,)), ((), ()))                      # contract over the node dimension
    cs_ref[...] += lax.dot_general(oh, x, dn, preferred_element_type=jnp.float32)
    sq_ref[...] += lax.dot_general(oh, x * x, dn, preferred_element_type=jnp.float32)
    cnt_ref[...] += jnp.sum(oh, axis=0, keepdims=True)


# ----------------------------------------------------------------------------
# Pass 2: o = x * scale_n + shift_n  (mean subtraction and bias folded into shift).
# ----------------------------------------------------------------------------
def _apply_kernel(x_ref, b_ref, scale_ref, shift_ref, o_ref):
    x = x_ref[...].astype(jnp.float32)                 # (TN, D)
    bt = b_ref[...]                                    # (TN, 1) int32
    tn = x.shape[0]
    g = scale_ref.shape[0]
    oh = (lax.broadcasted_iota(jnp.int32, (tn, g), 1) == bt).astype(jnp.float32)

    scale_n = jnp.dot(oh, scale_ref[...], preferred_element_type=jnp.float32)   # (TN, D)
    shift_n = jnp.dot(oh, shift_ref[...], preferred_element_type=jnp.float32)   # (TN, D)
    o_ref[...] = (x * scale_n + shift_n).astype(o_ref.dtype)


# ----------------------------------------------------------------------------
# Wrapper: node tiling, two Pallas passes, tiny per-graph math in XLA between them.
# ----------------------------------------------------------------------------
@functools.partial(jax.jit, static_argnames=('num_graphs', 'irreps', 'eps',
                                             'normalization', 'node_tile'))
def instance_norm_pallas(x, batch, weight, bias, *, num_graphs, irreps,
                         eps=1e-5, normalization='component', node_tile=4096):
    N, D_in = x.shape
    irreps = tuple((int(mul), int(l)) for mul, l in irreps)
    rnorm_np, bcast_np, smask_np, scalar_cols, D, F = build_structure(irreps, normalization)
    assert D == D_in, f"input last dim {D_in} != irreps.dim {D}"

    G = int(num_graphs)
    G_pad = _round_up(max(G, 1), 8)                    # sublane-aligned graph dim

    # Node tiling: even tile count so the stats pass splits across two TensorCores,
    # tile height 8-aligned, minimal row padding.
    n_tiles = _round_up(max(2, _cdiv(N, max(int(node_tile), 8))), 2)
    TN = _round_up(_cdiv(N, n_tiles), 8)
    N_pad = n_tiles * TN
    half = n_tiles // 2

    # Pad only along N (zeros), keep the input dtype; padded rows get an invalid graph id.
    x_in = x if N_pad == N else jnp.pad(x, ((0, N_pad - N), (0, 0)))
    bt = batch.astype(jnp.int32).reshape(N, 1)
    if N_pad != N:
        bt = jnp.pad(bt, ((0, N_pad - N), (0, 0)), constant_values=G_pad)

    vmem_bytes = 48 * 1024 * 1024                      # headroom under v7x's 64 MiB physical
    xbytes = x.dtype.itemsize

    # ---------------- pass 1: per-graph sums (2-way core split) --------------------------
    stat_flops = 2 * (2 * N_pad * G_pad * D) + N_pad * D
    stat_bytes = xbytes * N_pad * D + 4 * N_pad + 4 * 2 * (2 * G_pad * D + G_pad)
    part_cs, part_sq, part_cnt = pl.pallas_call(
        _stats_kernel,
        out_shape=(jax.ShapeDtypeStruct((2, G_pad, D), jnp.float32),
                   jax.ShapeDtypeStruct((2, G_pad, D), jnp.float32),
                   jax.ShapeDtypeStruct((2, 1, G_pad), jnp.float32)),
        grid=(2, half),
        in_specs=[pl.BlockSpec((TN, D), lambda c, i: (c * half + i, 0)),   # x tile
                  pl.BlockSpec((TN, 1), lambda c, i: (c * half + i, 0))],  # graph ids
        out_specs=(pl.BlockSpec((None, G_pad, D), lambda c, i: (c, 0, 0)),
                   pl.BlockSpec((None, G_pad, D), lambda c, i: (c, 0, 0)),
                   pl.BlockSpec((None, 1, G_pad), lambda c, i: (c, 0, 0))),
        compiler_params=pltpu.CompilerParams(
            dimension_semantics=("parallel", "arbitrary"),   # per-core partial accumulators
            vmem_limit_bytes=vmem_bytes),
        cost_estimate=pl.CostEstimate(flops=int(stat_flops), transcendentals=0,
                                      bytes_accessed=int(stat_bytes)),
    )(x_in, bt)

    # ---------------- tiny per-graph math (hoisted out of the apply loop, plain XLA) -----
    cs = part_cs.sum(axis=0)                           # (G_pad, D) sum(x)   per graph
    sq = part_sq.sum(axis=0)                           # (G_pad, D) sum(x^2) per graph
    counts = part_cnt.sum(axis=0).reshape(G_pad, 1)    # (G_pad, 1)

    rnorm = jnp.asarray(rnorm_np)                      # (D, F)
    bcast = jnp.asarray(bcast_np)                      # (F, D)
    smask = jnp.asarray(smask_np)                      # (1, D)
    w_row = weight.astype(jnp.float32).reshape(1, F)
    b_row = jnp.zeros((1, D), jnp.float32)
    if scalar_cols.size:
        b_row = b_row.at[0, scalar_cols].set(bias.astype(jnp.float32))

    invc = jnp.where(counts > 0, 1.0 / jnp.maximum(counts, 1.0), 0.0)   # empty graph -> 0
    mean = cs * invc
    mmean = mean * smask                               # mean only subtracted on l==0 cols
    msq = sq * invc - mmean * mean                     # E[(x-m)^2] on scalars, E[x^2] else
    fnorm = jnp.dot(msq, rnorm)                        # (G_pad, F) per-irrep-instance norm
    scale = lax.rsqrt(fnorm + float(eps)) * w_row      # (norm+eps)^-0.5 * weight
    scale_cols = jnp.dot(scale, bcast)                 # (G_pad, D) per-column scale
    shift_cols = b_row - mmean * scale_cols            # (G_pad, D) bias - mean*scale folded

    # ---------------- pass 2: normalize + affine ------------------------------------------
    apply_flops = 2 * (2 * N_pad * G_pad * D) + 2 * N_pad * D
    apply_bytes = 2 * xbytes * N_pad * D + 4 * N_pad + 4 * 2 * G_pad * D
    out_pad = pl.pallas_call(
        _apply_kernel,
        out_shape=jax.ShapeDtypeStruct((N_pad, D), x.dtype),
        grid=(n_tiles,),
        in_specs=[pl.BlockSpec((TN, D), lambda i: (i, 0)),     # x tile (native dtype)
                  pl.BlockSpec((TN, 1), lambda i: (i, 0)),     # graph ids
                  pl.BlockSpec((G_pad, D), lambda i: (0, 0)),  # scale_cols (resident)
                  pl.BlockSpec((G_pad, D), lambda i: (0, 0))], # shift_cols (resident)
        out_specs=pl.BlockSpec((TN, D), lambda i: (i, 0)),
        compiler_params=pltpu.CompilerParams(
            dimension_semantics=("parallel",),          # node tiles independent (megacore)
            vmem_limit_bytes=vmem_bytes),
        cost_estimate=pl.CostEstimate(flops=int(apply_flops), transcendentals=0,
                                      bytes_accessed=int(apply_bytes)),
    )(x_in, bt, scale_cols, shift_cols)

    return out_pad[:N] if N_pad != N else out_pad


# ----------------------------------------------------------------------------
# Pure-JAX reference (mirrors the PyTorch forward, reduce='mean', 'component').
# ----------------------------------------------------------------------------
def instance_norm_ref(x, batch, num_graphs, irreps, weight, bias, eps=1e-5):
    counts = jax.ops.segment_sum(jnp.ones(x.shape[0]), batch, num_segments=num_graphs)
    fields = []
    ix = iw = ib = 0
    for mul, l in irreps:
        d = 2 * l + 1
        field = x[:, ix:ix + mul * d].reshape(-1, mul, d)
        ix += mul * d
        if l == 0:
            fm = jax.ops.segment_sum(field.reshape(-1, mul), batch,
                                     num_segments=num_graphs) / counts[:, None]
            field = field - fm[batch].reshape(-1, mul, 1)
        fn = jnp.mean(field ** 2, axis=-1)                               # 'component'
        fn = jax.ops.segment_sum(fn, batch, num_segments=num_graphs) / counts[:, None]
        fn = (fn + eps) ** -0.5
        w = weight[iw:iw + mul]; iw += mul
        fn = fn * w[None, :]
        field = field * fn[batch][:, :, None]
        if d == 1:
            b = bias[ib:ib + mul]; ib += mul
            field = field + b.reshape(mul, 1)
        fields.append(field.reshape(-1, mul * d))
    return jnp.concatenate(fields, axis=-1)


if __name__ == "__main__":
    # irreps: 4x0e + 3x1o + 2x2e -> dim = 4 + 9 + 10 = 23, num_features = 9, num_scalar = 4
    irreps = ((4, 0), (3, 1), (2, 2))
    D = sum(mul * (2 * l + 1) for mul, l in irreps)
    F = sum(mul for mul, l in irreps)
    num_scalar = sum(mul for mul, l in irreps if l == 0)

    key = jax.random.PRNGKey(0)
    kx, kw, kb = jax.random.split(key, 3)

    N = 48
    num_graphs = 3
    sizes = (13, 20, 15)                       # nodes per graph
    batch = jnp.asarray(np.repeat(np.arange(num_graphs), sizes), jnp.int32)
    x = jax.random.normal(kx, (N, D), dtype=jnp.float32)
    weight = 1.0 + 0.5 * jax.random.normal(kw, (F,), dtype=jnp.float32)
    bias = 0.1 * jax.random.normal(kb, (num_scalar,), dtype=jnp.float32)

    ref = instance_norm_ref(x, batch, num_graphs, irreps, weight, bias, eps=1e-5)

    # node_tile=16 -> 4 node tiles (2 per stats core): exercises accumulation, the 2-way
    # stats split and padded rows with invalid graph ids.
    out = instance_norm_pallas(x, batch, weight, bias, num_graphs=num_graphs,
                               irreps=irreps, eps=1e-5, node_tile=16)
    out = jax.block_until_ready(out)
    np.testing.assert_allclose(np.asarray(out), np.asarray(ref), rtol=1e-4, atol=1e-4)

    # Empty trailing graph (num_graphs=4, graph 3 has no nodes): guarded invc -> no NaN.
    out2 = instance_norm_pallas(x, batch, weight, bias, num_graphs=num_graphs + 1,
                                irreps=irreps, eps=1e-5, node_tile=16)
    out2 = jax.block_until_ready(out2)
    assert not np.any(np.isnan(np.asarray(out2))), "NaN leaked from an empty graph"
    np.testing.assert_allclose(np.asarray(out2), np.asarray(ref), rtol=1e-4, atol=1e-4)

    # Default large node_tile: N already tiles evenly -> zero-copy (no pad) path.
    out3 = instance_norm_pallas(x, batch, weight, bias, num_graphs=num_graphs,
                                irreps=irreps, eps=1e-5)
    out3 = jax.block_until_ready(out3)
    np.testing.assert_allclose(np.asarray(out3), np.asarray(ref), rtol=1e-4, atol=1e-4)

    print("KERNEL_OK")
</pallas_src>

<mosaic_0001>
module attributes {stable_mosaic.version = 11 : i64} {
  func.func @_stats_kernel(%arg0: i32, %arg1: i32, %arg2: memref<16x23xf32, #tpu.memory_space<vmem>>, %arg3: memref<16x1xi32, #tpu.memory_space<vmem>>, %arg4: memref<1x8x23xf32, #tpu.memory_space<vmem>>, %arg5: memref<1x8x23xf32, #tpu.memory_space<vmem>>, %arg6: memref<1x1x8xf32, #tpu.memory_space<vmem>>) attributes {dimension_semantics = [#tpu.dimension_semantics<parallel>, #tpu.dimension_semantics<arbitrary>], iteration_bounds = array<i64: 2, 2>, scalar_prefetch = 0 : i64, scratch_operands = 0 : i64, tpu.core_type = #tpu.core_type<tc>, window_params = [{transform_indices = @transform_0, window_bounds = array<i64: 16, 23>}, {transform_indices = @transform_1, window_bounds = array<i64: 16, 1>}, {transform_indices = @transform_2, window_bounds = array<i64: 1, 8, 23>}, {transform_indices = @transform_3, window_bounds = array<i64: 1, 8, 23>}, {transform_indices = @transform_4, window_bounds = array<i64: 1, 1, 8>}]} {
    %c0_i32 = arith.constant 0 : i32
    %0 = arith.cmpi eq, %arg1, %c0_i32 : i32
    %1 = arith.extui %0 : i1 to i32
    %c0_i32_0 = arith.constant 0 : i32
    %2 = arith.cmpi ne, %1, %c0_i32_0 : i32
    scf.if %2 {
      %cst_24 = arith.constant 0.000000e+00 : f32
      %33 = vector.broadcast %cst_24 : f32 to vector<8x23xf32>
      %c0_25 = arith.constant 0 : index
      %c0_26 = arith.constant 0 : index
      %c0_27 = arith.constant 0 : index
      %34 = vector.load %arg4[%c0_25, %c0_26, %c0_27] : memref<1x8x23xf32, #tpu.memory_space<vmem>>, vector<1x8x23xf32>
      %35 = vector.shape_cast %34 : vector<1x8x23xf32> to vector<8x23xf32>
      %36 = vector.shape_cast %33 : vector<8x23xf32> to vector<1x8x23xf32>
      tpu.vector_store %arg4[%c0_25, %c0_26, %c0_27], %36 {strides = array<i32>} : memref<1x8x23xf32, #tpu.memory_space<vmem>>, vector<1x8x23xf32>,
      %cst_28 = arith.constant 0.000000e+00 : f32
      %37 = vector.broadcast %cst_28 : f32 to vector<8x23xf32>
      %c0_29 = arith.constant 0 : index
      %c0_30 = arith.constant 0 : index
      %c0_31 = arith.constant 0 : index
      %38 = vector.load %arg5[%c0_29, %c0_30, %c0_31] : memref<1x8x23xf32, #tpu.memory_space<vmem>>, vector<1x8x23xf32>
      %39 = vector.shape_cast %38 : vector<1x8x23xf32> to vector<8x23xf32>
      %40 = vector.shape_cast %37 : vector<8x23xf32> to vector<1x8x23xf32>
      tpu.vector_store %arg5[%c0_29, %c0_30, %c0_31], %40 {strides = array<i32>} : memref<1x8x23xf32, #tpu.memory_space<vmem>>, vector<1x8x23xf32>,
      %cst_32 = arith.constant 0.000000e+00 : f32
      %41 = vector.broadcast %cst_32 : f32 to vector<1x8xf32>
      %c0_33 = arith.constant 0 : index
      %c0_34 = arith.constant 0 : index
      %c0_35 = arith.constant 0 : index
      %42 = vector.load %arg6[%c0_33, %c0_34, %c0_35] : memref<1x1x8xf32, #tpu.memory_space<vmem>>, vector<1x1x8xf32>
      %43 = vector.shape_cast %42 : vector<1x1x8xf32> to vector<1x8xf32>
      %44 = vector.shape_cast %41 : vector<1x8xf32> to vector<1x1x8xf32>
      tpu.vector_store %arg6[%c0_33, %c0_34, %c0_35], %44 {strides = array<i32>} : memref<1x1x8xf32, #tpu.memory_space<vmem>>, vector<1x1x8xf32>,
    } else {
    }
    %c0 = arith.constant 0 : index
    %c0_1 = arith.constant 0 : index
    %3 = vector.load %arg2[%c0, %c0_1] : memref<16x23xf32, #tpu.memory_space<vmem>>, vector<16x23xf32>
    %c0_2 = arith.constant 0 : index
    %c0_3 = arith.constant 0 : index
    %4 = vector.load %arg3[%c0_2, %c0_3] : memref<16x1xi32, #tpu.memory_space<vmem>>, vector<16x1xi32>
    %5 = tpu.iota {dimensions = array<i32: 1>} : vector<16x8xi32>
    %6 = vector.broadcast %4 : vector<16x1xi32> to vector<16x8xi32>
    %7 = arith.cmpi eq, %5, %6 : vector<16x8xi32>
    %8 = arith.extui %7 : vector<16x8xi1> to vector<16x8xi32>
    %9 = arith.sitofp %8 : vector<16x8xi32> to vector<16x8xf32>
    %c0_4 = arith.constant 0 : index
    %c0_5 = arith.constant 0 : index
    %c0_6 = arith.constant 0 : index
    %10 = vector.load %arg4[%c0_4, %c0_5, %c0_6] : memref<1x8x23xf32, #tpu.memory_space<vmem>>, vector<1x8x23xf32>
    %11 = vector.shape_cast %10 : vector<1x8x23xf32> to vector<8x23xf32>
    %cst = arith.constant dense<0.000000e+00> : vector<8x23xf32>
    %12 = tpu.matmul %9, %3, %cst {dimension_numbers = #tpu.dot_dimension_numbers<[0], [0], [1], [1], [0, 1, 1, 1], [], []>} : vector<16x8xf32>, vector<16x23xf32>, vector<8x23xf32> -> vector<8x23xf32>
    %13 = arith.addf %11, %12 : vector<8x23xf32>
    %c0_7 = arith.constant 0 : index
    %c0_8 = arith.constant 0 : index
    %c0_9 = arith.constant 0 : index
    %14 = vector.load %arg4[%c0_7, %c0_8, %c0_9] : memref<1x8x23xf32, #tpu.memory_space<vmem>>, vector<1x8x23xf32>
    %15 = vector.shape_cast %14 : vector<1x8x23xf32> to vector<8x23xf32>
    %16 = vector.shape_cast %13 : vector<8x23xf32> to vector<1x8x23xf32>
    tpu.vector_store %arg4[%c0_7, %c0_8, %c0_9], %16 {strides = array<i32>} : memref<1x8x23xf32, #tpu.memory_space<vmem>>, vector<1x8x23xf32>,
    %c0_10 = arith.constant 0 : index
    %c0_11 = arith.constant 0 : index
    %c0_12 = arith.constant 0 : index
    %17 = vector.load %arg5[%c0_10, %c0_11, %c0_12] : memref<1x8x23xf32, #tpu.memory_space<vmem>>, vector<1x8x23xf32>
    %18 = vector.shape_cast %17 : vector<1x8x23xf32> to vector<8x23xf32>
    %19 = arith.mulf %3, %3 : vector<16x23xf32>
    %cst_13 = arith.constant dense<0.000000e+00> : vector<8x23xf32>
    %20 = tpu.matmul %9, %19, %cst_13 {dimension_numbers = #tpu.dot_dimension_numbers<[0], [0], [1], [1], [0, 1, 1, 1], [], []>} : vector<16x8xf32>, vector<16x23xf32>, vector<8x23xf32> -> vector<8x23xf32>
    %21 = arith.addf %18, %20 : vector<8x23xf32>
    %c0_14 = arith.constant 0 : index
    %c0_15 = arith.constant 0 : index
    %c0_16 = arith.constant 0 : index
    %22 = vector.load %arg5[%c0_14, %c0_15, %c0_16] : memref<1x8x23xf32, #tpu.memory_space<vmem>>, vector<1x8x23xf32>
    %23 = vector.shape_cast %22 : vector<1x8x23xf32> to vector<8x23xf32>
    %24 = vector.shape_cast %21 : vector<8x23xf32> to vector<1x8x23xf32>
    tpu.vector_store %arg5[%c0_14, %c0_15, %c0_16], %24 {strides = array<i32>} : memref<1x8x23xf32, #tpu.memory_space<vmem>>, vector<1x8x23xf32>,
    %c0_17 = arith.constant 0 : index
    %c0_18 = arith.constant 0 : index
    %c0_19 = arith.constant 0 : index
    %25 = vector.load %arg6[%c0_17, %c0_18, %c0_19] : memref<1x1x8xf32, #tpu.memory_space<vmem>>, vector<1x1x8xf32>
    %26 = vector.shape_cast %25 : vector<1x1x8xf32> to vector<1x8xf32>
    %cst_20 = arith.constant dense<0.000000e+00> : vector<8xf32>
    %27 = vector.multi_reduction <add>, %9, %cst_20 [0] : vector<16x8xf32> to vector<8xf32>
    %28 = vector.shape_cast %27 : vector<8xf32> to vector<1x8xf32>
    %29 = arith.addf %26, %28 : vector<1x8xf32>
    %c0_21 = arith.constant 0 : index
    %c0_22 = arith.constant 0 : index
    %c0_23 = arith.constant 0 : index
    %30 = vector.load %arg6[%c0_21, %c0_22, %c0_23] : memref<1x1x8xf32, #tpu.memory_space<vmem>>, vector<1x1x8xf32>
    %31 = vector.shape_cast %30 : vector<1x1x8xf32> to vector<1x8xf32>
    %32 = vector.shape_cast %29 : vector<1x8xf32> to vector<1x1x8xf32>
    tpu.vector_store %arg6[%c0_21, %c0_22, %c0_23], %32 {strides = array<i32>} : memref<1x1x8xf32, #tpu.memory_space<vmem>>, vector<1x1x8xf32>,
    return
  }
  func.func @transform_0(%arg0: i32, %arg1: i32) -> (i32, i32) {
    %c2_i32 = arith.constant 2 : i32
    %0 = arith.muli %arg0, %c2_i32 : i32
    %1 = arith.addi %0, %arg1 : i32
    %c0_i32 = arith.constant 0 : i32
    %c0_i32_0 = arith.constant 0 : i32
    return %1, %c0_i32 : i32, i32
  }
  func.func @transform_1(%arg0: i32, %arg1: i32) -> (i32, i32) {
    %c2_i32 = arith.constant 2 : i32
    %0 = arith.muli %arg0, %c2_i32 : i32
    %1 = arith.addi %0, %arg1 : i32
    %c0_i32 = arith.constant 0 : i32
    %c0_i32_0 = arith.constant 0 : i32
    return %1, %c0_i32 : i32, i32
  }
  func.func @transform_2(%arg0: i32, %arg1: i32) -> (i32, i32, i32) {
    %c0_i32 = arith.constant 0 : i32
    %c0_i32_0 = arith.constant 0 : i32
    %c0_i32_1 = arith.constant 0 : i32
    return %arg0, %c0_i32, %c0_i32_0 : i32, i32, i32
  }
  func.func @transform_3(%arg0: i32, %arg1: i32) -> (i32, i32, i32) {
    %c0_i32 = arith.constant 0 : i32
    %c0_i32_0 = arith.constant 0 : i32
    %c0_i32_1 = arith.constant 0 : i32
    return %arg0, %c0_i32, %c0_i32_0 : i32, i32, i32
  }
  func.func @transform_4(%arg0: i32, %arg1: i32) -> (i32, i32, i32) {
    %c0_i32 = arith.constant 0 : i32
    %c0_i32_0 = arith.constant 0 : i32
    %c0_i32_1 = arith.constant 0 : i32
    return %arg0, %c0_i32, %c0_i32_0 : i32, i32, i32
  }
}

module attributes {stable_mosaic.version = 11 : i64} {
  func.func @_apply_kernel(%arg0: i32, %arg1: memref<16x23xf32, #tpu.memory_space<vmem>>, %arg2: memref<16x1xi32, #tpu.memory_space<vmem>>, %arg3: memref<8x23xf32, #tpu.memory_space<vmem>>, %arg4: memref<8x23xf32, #tpu.memory_space<vmem>>, %arg5: memref<16x23xf32, #tpu.memory_space<vmem>>) attributes {dimension_semantics = [#tpu.dimension_semantics<parallel>], iteration_bounds = array<i64: 4>, scalar_prefetch = 0 : i64, scratch_operands = 0 : i64, tpu.core_type = #tpu.core_type<tc>, window_params = [{transform_indices = @transform_0, window_bounds = array<i64: 16, 23>}, {transform_indices = @transform_1, window_bounds = array<i64: 16, 1>}, {pipeline_mode = #tpu.pipeline_mode<synchronous>, transform_indices = @transform_2, window_bounds = array<i64: 8, 23>}, {pipeline_mode = #tpu.pipeline_mode<synchronous>, transform_indices = @transform_3, window_bounds = array<i64: 8, 23>}, {transform_indices = @transform_4, window_bounds = array<i64: 16, 23>}]} {
    %c0 = arith.constant 0 : index
    %c0_0 = arith.constant 0 : index
    %0 = vector.load %arg1[%c0, %c0_0] : memref<16x23xf32, #tpu.memory_space<vmem>>, vector<16x23xf32>
    %c0_1 = arith.constant 0 : index
    %c0_2 = arith.constant 0 : index
    %1 = vector.load %arg2[%c0_1, %c0_2] : memref<16x1xi32, #tpu.memory_space<vmem>>, vector<16x1xi32>
    %2 = tpu.iota {dimensions = array<i32: 1>} : vector<16x8xi32>
    %3 = vector.broadcast %1 : vector<16x1xi32> to vector<16x8xi32>
    %4 = arith.cmpi eq, %2, %3 : vector<16x8xi32>
    %5 = arith.extui %4 : vector<16x8xi1> to vector<16x8xi32>
    %6 = arith.sitofp %5 : vector<16x8xi32> to vector<16x8xf32>
    %c0_3 = arith.constant 0 : index
    %c0_4 = arith.constant 0 : index
    %7 = vector.load %arg3[%c0_3, %c0_4] : memref<8x23xf32, #tpu.memory_space<vmem>>, vector<8x23xf32>
    %cst = arith.constant dense<0.000000e+00> : vector<16x23xf32>
    %8 = tpu.matmul %6, %7, %cst {dimension_numbers = #tpu.dot_dimension_numbers<[1], [0], [0], [1], [0, 0, 1, 1], [], []>} : vector<16x8xf32>, vector<8x23xf32>, vector<16x23xf32> -> vector<16x23xf32>
    %c0_5 = arith.constant 0 : index
    %c0_6 = arith.constant 0 : index
    %9 = vector.load %arg4[%c0_5, %c0_6] : memref<8x23xf32, #tpu.memory_space<vmem>>, vector<8x23xf32>
    %cst_7 = arith.constant dense<0.000000e+00> : vector<16x23xf32>
    %10 = tpu.matmul %6, %9, %cst_7 {dimension_numbers = #tpu.dot_dimension_numbers<[1], [0], [0], [1], [0, 0, 1, 1], [], []>} : vector<16x8xf32>, vector<8x23xf32>, vector<16x23xf32> -> vector<16x23xf32>
    %11 = arith.mulf %0, %8 : vector<16x23xf32>
    %12 = arith.addf %11, %10 : vector<16x23xf32>
    %c0_8 = arith.constant 0 : index
    %c0_9 = arith.constant 0 : index
    %13 = vector.load %arg5[%c0_8, %c0_9] : memref<16x23xf32, #tpu.memory_space<vmem>>, vector<16x23xf32>
    tpu.vector_store %arg5[%c0_8, %c0_9], %12 {strides = array<i32>} : memref<16x23xf32, #tpu.memory_space<vmem>>, vector<16x23xf32>,
    return
  }
  func.func @transform_0(%arg0: i32) -> (i32, i32) {
    %c0_i32 = arith.constant 0 : i32
    %c0_i32_0 = arith.constant 0 : i32
    return %arg0, %c0_i32 : i32, i32
  }
  func.func @transform_1(%arg0: i32) -> (i32, i32) {
    %c0_i32 = arith.constant 0 : i32
    %c0_i32_0 = arith.constant 0 : i32
    return %arg0, %c0_i32 : i32, i32
  }
  func.func @transform_2(%arg0: i32) -> (i32, i32) {
    %c0_i32 = arith.constant 0 : i32
    %c0_i32_0 = arith.constant 0 : i32
    %c0_i32_1 = arith.constant 0 : i32
    return %c0_i32, %c0_i32_0 : i32, i32
  }
  func.func @transform_3(%arg0: i32) -> (i32, i32) {
    %c0_i32 = arith.constant 0 : i32
    %c0_i32_0 = arith.constant 0 : i32
    %c0_i32_1 = arith.constant 0 : i32
    return %c0_i32, %c0_i32_0 : i32, i32
  }
  func.func @transform_4(%arg0: i32) -> (i32, i32) {
    %c0_i32 = arith.constant 0 : i32
    %c0_i32_0 = arith.constant 0 : i32
    return %arg0, %c0_i32 : i32, i32
  }
}

</mosaic_0001>

<llo_original>
// kernel: instance_norm_pallas.2
$region0: #{instance_norm_pallas.2}
  #allocation0 [shape = 'u32[]', space=smem, size = 0x4, offset = 0x4, fixed_abs, tag = 'smem constant byte address 0x4 - core index']
  #allocation1 [shape = 'u32[144,128]{1,0:T(1,128)}', space=vmem, size = 0x12000, scoped, tag = 'internal scratch']
  %s0 = inlined_call_operand.vmem [shape: f32[64,23], index: 0, kind: input, shape index: {}]
  %s1 = inlined_call_operand.vmem [shape: s32[64,1], index: 1, kind: input, shape index: {}]
  %s2 = inlined_call_operand.vmem [shape: f32[2,8,23], index: 2, kind: output, shape index: {0}]
  %s3 = inlined_call_operand.vmem [shape: f32[2,8,23], index: 3, kind: output, shape index: {1}]
  %s4 = inlined_call_operand.vmem [shape: f32[2,1,8], index: 4, kind: output, shape index: {2}]
  %5 = xla_tuple %s2, %s3, %s4
  %s6 = sld [smem:[#allocation0]]
  $region61: #{instance_norm_pallas.2} parent=0
    _
  %s8 = ssub.s32 1, %s6
  %s9 = scalar_select 0, %s8, %s6
  loop: start=0, step=1, limit=6
  $region2: #{instance_norm_pallas.2} parent=0 // loop_pre_header
    _
  $region3: #{instance_norm_pallas.2} parent=0 // loop_header
    %s11 = sphi 0, %s15
    %p12 = scmp.ge.s32.totalorder %s11, 6
    %s18 = sphi 0, %s30
    %s19 = sphi 0, %s26
    %s20 = sphi 0, %s18
    %s21 = sphi 0, %s19
    %s22 = sphi 0, %s20
    %s23 = sphi 0, %s21
    %s37 = sphi 0, %s39
    %s40 = sphi 0, %s37
    %s41 = sphi 0, %s40
    %s57 = sphi 0, %s41
    %s67 = sphi 0, %s69
    %s70 = sphi 0, %s67
    %s71 = sphi 0, %s70
    %s87 = sphi 0, %s71
    %s93 = sphi 0, %s95
    %s96 = sphi 0, %s93
    %s97 = sphi 0, %s96
    %s113 = sphi 0, %s97
    %s119 = sphi 0, %s121
    %s122 = sphi 0, %s119
    %s123 = sphi 0, %s122
    %s139 = sphi 0, %s123
    %s145 = sphi 0, %s147
    %s148 = sphi 0, %s145
    %s149 = sphi 0, %s148
    %s165 = sphi 0, %s149
  $region4: #{instance_norm_pallas.2} parent=0 // loop_header_branch
    %14 = sbr.rel (%p12) target = $region8
  $region5: #{instance_norm_pallas.2} parent=0 // loop_body
    %s16 = ssub.s32 %s11, 1
    %s17 = ssub.s32 %s11, 2
    %s24 = sadd.s32 1, %s19
    %p25 = scmp.ge.s32.totalorder %s24, 2
    %s26 = scalar_select %p25, 0, %s24
    %s27 = sadd.s32 1, %s18
    %s28 = scalar_select %p25, %s27, %s18
    %p29 = scmp.ge.s32.totalorder %s28, 2
    %s30 = scalar_select %p29, 0, %s28
    %s31 = smul.u32 %s18, 2
    %s32 = sadd.s32 %s31, %s19
    %s33 = smul.u32 %s30, 2
    %s34 = sadd.s32 %s33, %s26
    %s35 = ssub.s32 %s32, %s34
    %p36 = scmp.eq.s32.totalorder %s35, 0
    %s38 = sadd.s32 %s37, 1
    %s39 = scalar_select %p36, %s37, %s38
    %p42 = pneg %p36
    %p43 = scmp.eq.s32.totalorder %s11, 3
    %p44 = por %p42, %p43
    %p45 = scmp.ne.s32.totalorder %s37, %s40
    %p46 = scmp.eq.s32.totalorder %s11, 0
    %p47 = por %p45, %p46
    %p48 = scmp.ne.s32.totalorder %s37, %s40
    %p49 = scmp.eq.s32.totalorder %s16, 3
    %p50 = por %p48, %p49
    %p51 = scmp.ne.s32.totalorder %s40, %s41
    %p52 = scmp.eq.s32.totalorder %s16, 0
    %p53 = por %p51, %p52
    %p54 = scmp.ne.s32.totalorder %s40, %s41
    %p55 = scmp.eq.s32.totalorder %s17, 3
    %p56 = por %p54, %p55
    %p58 = scmp.ne.s32.totalorder %s41, %s57
    %p59 = scmp.eq.s32.totalorder %s17, 0
    %p60 = por %p58, %p59
    %s61 = smul.u32 %s18, 2
    %s62 = sadd.s32 %s61, %s19
    %s63 = smul.u32 %s30, 2
    %s64 = sadd.s32 %s63, %s26
    %s65 = ssub.s32 %s62, %s64
    %p66 = scmp.eq.s32.totalorder %s65, 0
    %s68 = sadd.s32 %s67, 1
    %s69 = scalar_select %p66, %s67, %s68
    %p72 = pneg %p66
    %p73 = scmp.eq.s32.totalorder %s11, 3
    %p74 = por %p72, %p73
    %p75 = scmp.ne.s32.totalorder %s67, %s70
    %p76 = scmp.eq.s32.totalorder %s11, 0
    %p77 = por %p75, %p76
    %p78 = scmp.ne.s32.totalorder %s67, %s70
    %p79 = scmp.eq.s32.totalorder %s16, 3
    %p80 = por %p78, %p79
    %p81 = scmp.ne.s32.totalorder %s70, %s71
    %p82 = scmp.eq.s32.totalorder %s16, 0
    %p83 = por %p81, %p82
    %p84 = scmp.ne.s32.totalorder %s70, %s71
    %p85 = scmp.eq.s32.totalorder %s17, 3
    %p86 = por %p84, %p85
    %p88 = scmp.ne.s32.totalorder %s71, %s87
    %p89 = scmp.eq.s32.totalorder %s17, 0
    %p90 = por %p88, %p89
    %s91 = ssub.s32 %s18, %s30
    %p92 = scmp.eq.s32.totalorder %s91, 0
    %s94 = sadd.s32 %s93, 1
    %s95 = scalar_select %p92, %s93, %s94
    %p98 = pneg %p92
    %p99 = scmp.eq.s32.totalorder %s11, 3
    %p100 = por %p98, %p99
    %p101 = scmp.ne.s32.totalorder %s93, %s96
    %p102 = scmp.eq.s32.totalorder %s11, 0
    %p103 = por %p101, %p102
    %p104 = scmp.ne.s32.totalorder %s93, %s96
    %p105 = scmp.eq.s32.totalorder %s16, 3
    %p106 = por %p104, %p105
    %p107 = scmp.ne.s32.totalorder %s96, %s97
    %p108 = scmp.eq.s32.totalorder %s16, 0
    %p109 = por %p107, %p108
    %p110 = scmp.ne.s32.totalorder %s96, %s97
    %p111 = scmp.eq.s32.totalorder %s17, 3
    %p112 = por %p110, %p111
    %p114 = scmp.ne.s32.totalorder %s97, %s113
    %p115 = scmp.eq.s32.totalorder %s17, 0
    %p116 = por %p114, %p115
    %s117 = ssub.s32 %s18, %s30
    %p118 = scmp.eq.s32.totalorder %s117, 0
    %s120 = sadd.s32 %s119, 1
    %s121 = scalar_select %p118, %s119, %s120
    %p124 = pneg %p118
    %p125 = scmp.eq.s32.totalorder %s11, 3
    %p126 = por %p124, %p125
    %p127 = scmp.ne.s32.totalorder %s119, %s122
    %p128 = scmp.eq.s32.totalorder %s11, 0
    %p129 = por %p127, %p128
    %p130 = scmp.ne.s32.totalorder %s119, %s122
    %p131 = scmp.eq.s32.totalorder %s16, 3
    %p132 = por %p130, %p131
    %p133 = scmp.ne.s32.totalorder %s122, %s123
    %p134 = scmp.eq.s32.totalorder %s16, 0
    %p135 = por %p133, %p134
    %p136 = scmp.ne.s32.totalorder %s122, %s123
    %p137 = scmp.eq.s32.totalorder %s17, 3
    %p138 = por %p136, %p137
    %p140 = scmp.ne.s32.totalorder %s123, %s139
    %p141 = scmp.eq.s32.totalorder %s17, 0
    %p142 = por %p140, %p141
    %s143 = ssub.s32 %s18, %s30
    %p144 = scmp.eq.s32.totalorder %s143, 0
    %s146 = sadd.s32 %s145, 1
    %s147 = scalar_select %p144, %s145, %s146
    %p150 = pneg %p144
    %p151 = scmp.eq.s32.totalorder %s11, 3
    %p152 = por %p150, %p151
    %p153 = scmp.ne.s32.totalorder %s145, %s148
    %p154 = scmp.eq.s32.totalorder %s11, 0
    %p155 = por %p153, %p154
    %p156 = scmp.ne.s32.totalorder %s145, %s148
    %p157 = scmp.eq.s32.totalorder %s16, 3
    %p158 = por %p156, %p157
    %p159 = scmp.ne.s32.totalorder %s148, %s149
    %p160 = scmp.eq.s32.totalorder %s16, 0
    %p161 = por %p159, %p160
    %p162 = scmp.ne.s32.totalorder %s148, %s149
    %p163 = scmp.eq.s32.totalorder %s17, 3
    %p164 = por %p162, %p163
    %p166 = scmp.ne.s32.totalorder %s149, %s165
    %p167 = scmp.eq.s32.totalorder %s17, 0
    %p168 = por %p166, %p167
    %p169 = scmp.le.s32.totalorder 1, %s11
    %p170 = scmp.lt.s32.totalorder %s11, 5
    %p171 = pnand %p169, %p170
    %p172 = pneg %p171
    // Predicated region
    $region9: #{instance_norm_pallas.2} parent=5 // pred_check
      _
    $region10: #{instance_norm_pallas.2} parent=5 // pred_check_branch
      %174 = sbr.rel (%p171) target = $region12
    $region11: #{instance_norm_pallas.2} parent=5 // pred_region
      %s175 = ssub.s32 %s11, 1
    $region12: #{instance_norm_pallas.2} parent=5 // pred_fallthru
      _
    %p176 = scmp.lt.s32.totalorder %s11, 4
    // Predicated region
    $region13: #{instance_norm_pallas.2} parent=5 // pred_check
      %p177 = pneg %p176
    $region14: #{instance_norm_pallas.2} parent=5 // pred_check_branch
      %179 = sbr.rel (%p177) target = $region16
    $region15: #{instance_norm_pallas.2} parent=5 // pred_region
      // Predicated region
      $region17: #{instance_norm_pallas.2} parent=15 // pred_check
        %p180 = pneg %p47
      $region18: #{instance_norm_pallas.2} parent=15 // pred_check_branch
        %182 = sbr.rel (%p180) target = $region20
      $region19: #{instance_norm_pallas.2} parent=15 // pred_region
        %s183 = smul.u32 %s18, 2
        %s184 = sadd.s32 %s183, %s19
        %s185 = smul.u32 2, %s184
        %p186 = scmp.lt.s32.totalorder %s185, 7
        %s187 = scalar_select %p186, %s185, 7
        %s188 = smul.addr %s187, 8
        %s189 = scalar_lea.vmem %s0, %s188
        %s190 = smul.u32 %s18, 2
        %s191 = sadd.s32 %s190, %s19
        %s192 = smul.u32 2, %s191
      $region20: #{instance_norm_pallas.2} parent=15 // pred_fallthru
        _
      // Predicated region
      $region21: #{instance_norm_pallas.2} parent=15 // pred_check
        %p193 = pneg %p77
      $region22: #{instance_norm_pallas.2} parent=15 // pred_check_branch
        %195 = sbr.rel (%p193) target = $region24
      $region23: #{instance_norm_pallas.2} parent=15 // pred_region
        %s196 = smul.u32 %s18, 2
        %s197 = sadd.s32 %s196, %s19
        %s198 = smul.u32 2, %s197
        %p199 = scmp.lt.s32.totalorder %s198, 7
        %s200 = scalar_select %p199, %s198, 7
        %s201 = smul.addr %s200, 8
        %s202 = scalar_lea.vmem %s1, %s201
        %s203 = smul.u32 %s18, 2
        %s204 = sadd.s32 %s203, %s19
        %s205 = smul.u32 2, %s204
      $region24: #{instance_norm_pallas.2} parent=15 // pred_fallthru
        _
    $region16: #{instance_norm_pallas.2} parent=5 // pred_fallthru
      _
    %p206 = scmp.le.s32.totalorder 1, %s11
    %p207 = scmp.lt.s32.totalorder %s11, 5
    %p208 = pnand %p206, %p207
    %p209 = pneg %p208
    // Predicated region
    $region25: #{instance_norm_pallas.2} parent=5 // pred_check
      _
    $region26: #{instance_norm_pallas.2} parent=5 // pred_check_branch
      %211 = sbr.rel (%p208) target = $region28
    $region27: #{instance_norm_pallas.2} parent=5 // pred_region
      %s212 = ssub.s32 %s11, 1
      %s213 = smul.u32 %s20, 2
      %s214 = sadd.s32 %s213, %s21
      %s215 = smul.u32 2, %s214
      %p216 = scmp.lt.s32.totalorder %s215, 7
      %s217 = scalar_select %p216, %s215, 7
      %s218 = smul.addr %s217, 8
      %s219 = scalar_lea.vmem %s0, %s218
      %p220 = pneg %p53
      %p221 = pneg %p50
      %s222 = smul.u32 %s20, 2
      %s223 = sadd.s32 %s222, %s21
      %s224 = smul.u32 2, %s223
      %p225 = scmp.lt.s32.totalorder %s224, 7
      %s226 = scalar_select %p225, %s224, 7
      %s227 = smul.addr %s226, 8
      %s228 = scalar_lea.vmem %s1, %s227
      %p229 = pneg %p83
      %p230 = pneg %p80
      %p231 = pneg %p109
      %p232 = pneg %p106
      %p233 = scmp.lt.s32.totalorder %s20, 1
      %s234 = scalar_select %p233, %s20, 1
      %s235 = smul.addr %s234, 8
      %s236 = scalar_lea.vmem %s2, %s235
      %p237 = pneg %p135
      %p238 = pneg %p132
      %p239 = scmp.lt.s32.totalorder %s20, 1
      %s240 = scalar_select %p239, %s20, 1
      %s241 = smul.addr %s240, 8
      %s242 = scalar_lea.vmem %s3, %s241
      %p243 = pneg %p161
      %p244 = pneg %p158
      %p245 = scmp.lt.s32.totalorder %s20, 1
      %s246 = scalar_select %p245, %s20, 1
      %s247 = scalar_lea.vmem %s4, %s246
      %s248 = smul.u32 %s20, 2
      %s249 = sadd.s32 %s248, %s21
      %s250 = smul.u32 2, %s249
      %p251 = scmp.lt.s32.totalorder %s250, 7
      %s252 = scalar_select %p251, %s250, 7
      %s253 = smul.addr %s252, 8
      %s254 = scalar_lea.vmem %s0, %s253
      %s255 = smul.u32 %s20, 2
      %s256 = sadd.s32 %s255, %s21
      %s257 = smul.u32 2, %s256
      %s258 = smul.u32 %s20, 2
      %s259 = sadd.s32 %s258, %s21
      %s260 = smul.u32 2, %s259
      %p261 = scmp.lt.s32.totalorder %s260, 7
      %s262 = scalar_select %p261, %s260, 7
      %s263 = smul.addr %s262, 8
      %s264 = scalar_lea.vmem %s1, %s263
      %s265 = smul.u32 %s20, 2
      %s266 = sadd.s32 %s265, %s21
      %s267 = smul.u32 2, %s266
      %p268 = scmp.lt.s32.totalorder %s20, 1
      %s269 = scalar_select %p268, %s20, 1
      %s270 = smul.addr %s269, 8
      %s271 = scalar_lea.vmem %s2, %s270
      %p272 = scmp.lt.s32.totalorder %s20, 1
      %s273 = scalar_select %p272, %s20, 1
      %s274 = smul.addr %s273, 8
      %s275 = scalar_lea.vmem %s3, %s274
      %p276 = scmp.lt.s32.totalorder %s20, 1
      %s277 = scalar_select %p276, %s20, 1
      %s278 = scalar_lea.vmem %s4, %s277
      %p279 = scmp.eq.s32.totalorder %s21, 0
      // Predicated region
      $region29: #{instance_norm_pallas.2} parent=27 // pred_check
        %p280 = pneg %p279
      $region30: #{instance_norm_pallas.2} parent=27 // pred_check_branch
        %282 = sbr.rel (%p280) target = $region32
      $region31: #{instance_norm_pallas.2} parent=27 // pred_region
        %vm283 = vcmask 187392
        %284 = vst.msk [vmem:[%s271] sm:$0xff] %vm283, 0.0
        %285 = vst.msk [vmem:[%s275] sm:$0xff] %vm283, 0.0
        %vm286 = vcmask 57344
        %287 = vst.msk [vmem:[%s278] sm:$0x1] %vm286, 0.0
      $region32: #{instance_norm_pallas.2} parent=27 // pred_fallthru
        _
      %v288 = vld [vmem:[%s254] sm:$0xff]
      %v289 = vld [vmem:[%s254 + $0x8] sm:$0xff]
      %v290 = vld [vmem:[%s264] sm:$0xff]
      %v291 = vld [vmem:[%s264 + $0x8] sm:$0xff]
      %v292 = vlaneseq
      %v293 = vand.u32 %v292, 127
      %294 = vset.pattern.permute.xlu0 0
      %295 = vperm.xlu0 %294, %v290
      %v296 = vpop.permute.xlu0 %295
      %297 = vset.pattern.permute.xlu0 0
      %298 = vperm.xlu0 %297, %v291
      %v299 = vpop.permute.xlu0 %298
      %vm300 = vcmp.eq.s32.totalorder %v293, %v296
      %vm301 = vcmp.eq.s32.totalorder %v293, %v299
      %v302 = vsel %vm300, 1, 0
      %v303 = vsel %vm301, 1, 0
      %v304 = vcvt.s32.f32 %v302
      %v305 = vcvt.s32.f32 %v303
      %v306 = vld [vmem:[%s271] sm:$0xff]
      %307 = vxpose.xlu0.b32.start [1/16] %v304, 128
      %308 = vxpose.xlu0.b32.cont [2/16] %v305, 128
      %309 = vxpose.xlu0.b32.cont [3/16] 0.0, 128
      %310 = vxpose.xlu0.b32.cont [4/16] 0.0, 128
      %311 = vxpose.xlu0.b32.cont [5/16] 0.0, 128
      %312 = vxpose.xlu0.b32.cont [6/16] 0.0, 128
      %313 = vxpose.xlu0.b32.cont [7/16] 0.0, 128
      %314 = vxpose.xlu0.b32.cont [8/16] 0.0, 128
      %315 = vxpose.xlu0.b32.cont [9/16] 0.0, 128
      %316 = vxpose.xlu0.b32.cont [10/16] 0.0, 128
      %317 = vxpose.xlu0.b32.cont [11/16] 0.0, 128
      %318 = vxpose.xlu0.b32.cont [12/16] 0.0, 128
      %319 = vxpose.xlu0.b32.cont [13/16] 0.0, 128
      %320 = vxpose.xlu0.b32.cont [14/16] 0.0, 128
      %321 = vxpose.xlu0.b32.cont [15/16] 0.0, 128
      %322 = vxpose.xlu0.b32.end [16/16] 0.0, 128
      %v323 = vpop.trf.xlu0
      %v324 = vpop.trf.xlu0
      %v325 = vpop.trf.xlu0
      %v326 = vpop.trf.xlu0
      %v327 = vpop.trf.xlu0
      %v328 = vpop.trf.xlu0
      %v329 = vpop.trf.xlu0
      %v330 = vpop.trf.xlu0
      %v331 = vpop.trf.xlu0
      %v332 = vpop.trf.xlu0
      %v333 = vpop.trf.xlu0
      %v334 = vpop.trf.xlu0
      %v335 = vpop.trf.xlu0
      %v336 = vpop.trf.xlu0
      %v337 = vpop.trf.xlu0
      %v338 = vpop.trf.xlu0
      %vm339 = vcmask 130048
      %v341 = vsel %vm339, %v323, 0
      %343 = vmatprep.subr.mxu0 0.0
      %344 = vmatpush1.msra.mxu0 %v288
      %345 = vmatprep.subr.mxu0 0.0
      %346 = vmatpush1.msra.mxu0 %v289
      %347 = vmatprep.subr.mxu0 0.0
      %348 = vmatpush1.msra.mxu0 0.0
      %349 = vmatprep.subr.mxu0 0.0
      %350 = vmatpush1.msra.mxu0 0.0
      %351 = vmatprep.subr.mxu0 0.0
      %352 = vmatpush1.msra.mxu0 0.0
      %353 = vmatprep.subr.mxu0 0.0
      %354 = vmatpush1.msra.mxu0 0.0
      %355 = vmatprep.subr.mxu0 0.0
      %356 = vmatpush1.msra.mxu0 0.0
      %357 = vmatprep.subr.mxu0 0.0
      %358 = vmatpush1.msra.mxu0 0.0
      %359 = vmatprep.subr.mxu0 0.0
      %360 = vmatpush1.msra.mxu0 0.0
      %361 = vmatprep.subr.mxu0 0.0
      %362 = vmatpush1.msra.mxu0 0.0
      %363 = vmatprep.subr.mxu0 0.0
      %364 = vmatpush1.msra.mxu0 0.0
      %365 = vmatprep.subr.mxu0 0.0
      %366 = vmatpush1.msra.mxu0 0.0
      %367 = vmatprep.subr.mxu0 0.0
      %368 = vmatpush1.msra.mxu0 0.0
      %369 = vmatprep.subr.mxu0 0.0
      %370 = vmatpush1.msra.mxu0 0.0
      %371 = vmatprep.subr.mxu0 0.0
      %372 = vmatpush1.msra.mxu0 0.0
      %373 = vmatprep.subr.mxu0 0.0
      %374 = vmatpush1.msra.mxu0 0.0
      %375 = vmatprep.subr.mxu0 0.0
      %376 = vmatpush1.msra.mxu0 0.0
      %377 = vmatprep.subr.mxu0 0.0
      %378 = vmatpush1.msra.mxu0 0.0
      %379 = vmatprep.subr.mxu0 0.0
      %380 = vmatpush1.msra.mxu0 0.0
      %381 = vmatprep.subr.mxu0 0.0
      %382 = vmatpush1.msra.mxu0 0.0
      %383 = vmatprep.subr.mxu0 0.0
      %384 = vmatpush1.msra.mxu0 0.0
      %385 = vmatprep.subr.mxu0 0.0
      %386 = vmatpush1.msra.mxu0 0.0
      %387 = vmatprep.subr.mxu0 0.0
      %388 = vmatpush1.msra.mxu0 0.0
      %389 = vmatprep.subr.mxu0 0.0
      %390 = vmatpush1.msra.mxu0 0.0
      %391 = vmatprep.subr.mxu0 0.0
      %392 = vmatpush1.msra.mxu0 0.0
      %393 = vmatprep.subr.mxu0 0.0
      %394 = vmatpush1.msra.mxu0 0.0
      %395 = vmatprep.subr.mxu0 0.0
      %396 = vmatpush1.msra.mxu0 0.0
      %397 = vmatprep.subr.mxu0 0.0
      %398 = vmatpush1.msra.mxu0 0.0
      %399 = vmatprep.subr.mxu0 0.0
      %400 = vmatpush1.msra.mxu0 0.0
      %401 = vmatprep.subr.mxu0 0.0
      %402 = vmatpush1.msra.mxu0 0.0
      %403 = vmatprep.subr.mxu0 0.0
      %404 = vmatpush1.msra.mxu0 0.0
      %405 = vmatprep.subr.mxu0 0.0
      %406 = vmatpush1.msra.mxu0 0.0
      %407 = vmatprep.mubr.f32.mxu0 0.0
      %408 = vmatmul.mubr.f32.gmra.mrb[0].mxu0 %v341
      %v409 = vpop.f32.mrb[0].mxu0
      %v410 = vadd.f32 0.0, %v409
      %v411 = vpop.f32.mrb[0].mxu0
      %412 = vdwg.mxu0
      %v413 = vadd.f32 %v306, %v410
      %vm414 = vcmask 187392
      %415 = vst.msk [vmem:[%s271] sm:$0xff] %vm414, %v413
      %v416 = vld [vmem:[%s275] sm:$0xff]
      %v417 = vmul.f32 %v288, %v288
      %v418 = vmul.f32 %v289, %v289
      %419 = vmatprep.subr.mxu0 0.0
      %420 = vmatpush1.msra.mxu0 %v417
      %421 = vmatprep.subr.mxu0 0.0
      %422 = vmatpush1.msra.mxu0 %v418
      %423 = vmatprep.subr.mxu0 0.0
      %424 = vmatpush1.msra.mxu0 0.0
      %425 = vmatprep.subr.mxu0 0.0
      %426 = vmatpush1.msra.mxu0 0.0
      %427 = vmatprep.subr.mxu0 0.0
      %428 = vmatpush1.msra.mxu0 0.0
      %429 = vmatprep.subr.mxu0 0.0
      %430 = vmatpush1.msra.mxu0 0.0
      %431 = vmatprep.subr.mxu0 0.0
      %432 = vmatpush1.msra.mxu0 0.0
      %433 = vmatprep.subr.mxu0 0.0
      %434 = vmatpush1.msra.mxu0 0.0
      %435 = vmatprep.subr.mxu0 0.0
      %436 = vmatpush1.msra.mxu0 0.0
      %437 = vmatprep.subr.mxu0 0.0
      %438 = vmatpush1.msra.mxu0 0.0
      %439 = vmatprep.subr.mxu0 0.0
      %440 = vmatpush1.msra.mxu0 0.0
      %441 = vmatprep.subr.mxu0 0.0
      %442 = vmatpush1.msra.mxu0 0.0
      %443 = vmatprep.subr.mxu0 0.0
      %444 = vmatpush1.msra.mxu0 0.0
      %445 = vmatprep.subr.mxu0 0.0
      %446 = vmatpush1.msra.mxu0 0.0
      %447 = vmatprep.subr.mxu0 0.0
      %448 = vmatpush1.msra.mxu0 0.0
      %449 = vmatprep.subr.mxu0 0.0
      %450 = vmatpush1.msra.mxu0 0.0
      %451 = vmatprep.subr.mxu0 0.0
      %452 = vmatpush1.msra.mxu0 0.0
      %453 = vmatprep.subr.mxu0 0.0
      %454 = vmatpush1.msra.mxu0 0.0
      %455 = vmatprep.subr.mxu0 0.0
      %456 = vmatpush1.msra.mxu0 0.0
      %457 = vmatprep.subr.mxu0 0.0
      %458 = vmatpush1.msra.mxu0 0.0
      %459 = vmatprep.subr.mxu0 0.0
      %460 = vmatpush1.msra.mxu0 0.0
      %461 = vmatprep.subr.mxu0 0.0
      %462 = vmatpush1.msra.mxu0 0.0
      %463 = vmatprep.subr.mxu0 0.0
      %464 = vmatpush1.msra.mxu0 0.0
      %465 = vmatprep.subr.mxu0 0.0
      %466 = vmatpush1.msra.mxu0 0.0
      %467 = vmatprep.subr.mxu0 0.0
      %468 = vmatpush1.msra.mxu0 0.0
      %469 = vmatprep.subr.mxu0 0.0
      %470 = vmatpush1.msra.mxu0 0.0
      %471 = vmatprep.subr.mxu0 0.0
      %472 = vmatpush1.msra.mxu0 0.0
      %473 = vmatprep.subr.mxu0 0.0
      %474 = vmatpush1.msra.mxu0 0.0
      %475 = vmatprep.subr.mxu0 0.0
      %476 = vmatpush1.msra.mxu0 0.0
      %477 = vmatprep.subr.mxu0 0.0
      %478 = vmatpush1.msra.mxu0 0.0
      %479 = vmatprep.subr.mxu0 0.0
      %480 = vmatpush1.msra.mxu0 0.0
      %481 = vmatprep.subr.mxu0 0.0
      %482 = vmatpush1.msra.mxu0 0.0
      %483 = vmatprep.mubr.f32.mxu0 0.0
      %484 = vmatmul.mubr.f32.gmra.mrb[0].mxu0 %v341
      %v485 = vpop.f32.mrb[0].mxu0
      %v486 = vadd.f32 0.0, %v485
      %v487 = vpop.f32.mrb[0].mxu0
      %488 = vdwg.mxu0
      %v489 = vadd.f32 %v416, %v486
      %490 = vst.msk [vmem:[%s275] sm:$0xff] %vm414, %v489
      %v491 = vld [vmem:[%s278] sm:$0x1]
      %vm492 = vcmask 64512
      %v493 = vsel %vm492, %v304, 0.0
      %v494 = vsel %vm492, %v305, 0.0
      %v495 = vadd.f32 %v493, %v494
      %v496 = vrot.slane %v495, 4
      %v497 = vadd.f32 %v495, %v496
      %v498 = vrot.slane %v497, 2
      %v499 = vadd.f32 %v497, %v498
      %v500 = vrot.slane %v499, 1
      %v501 = vadd.f32 %v499, %v500
      %v502 = vadd.f32 %v491, %v501
      %vm503 = vcmask 57344
      %504 = vst.msk [vmem:[%s278] sm:$0x1] %vm503, %v502
      %p505 = scmp.lt.s32.totalorder %s20, 1
      %s506 = scalar_select %p505, %s20, 1
      %s507 = smul.addr %s506, 8
      %s508 = scalar_lea.vmem %s2, %s507
      %p509 = scmp.lt.s32.totalorder %s20, 1
      %s510 = scalar_select %p509, %s20, 1
      %s511 = smul.addr %s510, 8
      %s512 = scalar_lea.vmem %s3, %s511
      %p513 = scmp.lt.s32.totalorder %s20, 1
      %s514 = scalar_select %p513, %s20, 1
      %s515 = scalar_lea.vmem %s4, %s514
      // Predicated region
      $region33: #{instance_norm_pallas.2} parent=27 // pred_check
        %p516 = pneg %p106
      $region34: #{instance_norm_pallas.2} parent=27 // pred_check_branch
        %518 = sbr.rel (%p516) target = $region36
      $region35: #{instance_norm_pallas.2} parent=27 // pred_region
        _
      $region36: #{instance_norm_pallas.2} parent=27 // pred_fallthru
        _
      // Predicated region
      $region37: #{instance_norm_pallas.2} parent=27 // pred_check
        %p519 = pneg %p132
      $region38: #{instance_norm_pallas.2} parent=27 // pred_check_branch
        %521 = sbr.rel (%p519) target = $region40
      $region39: #{instance_norm_pallas.2} parent=27 // pred_region
        _
      $region40: #{instance_norm_pallas.2} parent=27 // pred_fallthru
        _
      // Predicated region
      $region41: #{instance_norm_pallas.2} parent=27 // pred_check
        %p522 = pneg %p158
      $region42: #{instance_norm_pallas.2} parent=27 // pred_check_branch
        %524 = sbr.rel (%p522) target = $region44
      $region43: #{instance_norm_pallas.2} parent=27 // pred_region
        _
      $region44: #{instance_norm_pallas.2} parent=27 // pred_fallthru
        _
    $region28: #{instance_norm_pallas.2} parent=5 // pred_fallthru
      _
    %p525 = scmp.le.s32.totalorder 2, %s11
    // Predicated region
    $region45: #{instance_norm_pallas.2} parent=5 // pred_check
      %p526 = pneg %p525
    $region46: #{instance_norm_pallas.2} parent=5 // pred_check_branch
      %528 = sbr.rel (%p526) target = $region48
    $region47: #{instance_norm_pallas.2} parent=5 // pred_region
      %s529 = ssub.s32 %s11, 2
      // Predicated region
      $region49: #{instance_norm_pallas.2} parent=47 // pred_check
        %p530 = pneg %p112
      $region50: #{instance_norm_pallas.2} parent=47 // pred_check_branch
        %532 = sbr.rel (%p530) target = $region52
      $region51: #{instance_norm_pallas.2} parent=47 // pred_region
        %p533 = scmp.lt.s32.totalorder %s22, 1
        %s534 = scalar_select %p533, %s22, 1
        %s535 = smul.addr %s534, 8
        %s536 = scalar_lea.vmem %s2, %s535
      $region52: #{instance_norm_pallas.2} parent=47 // pred_fallthru
        _
      // Predicated region
      $region53: #{instance_norm_pallas.2} parent=47 // pred_check
        %p537 = pneg %p138
      $region54: #{instance_norm_pallas.2} parent=47 // pred_check_branch
        %539 = sbr.rel (%p537) target = $region56
      $region55: #{instance_norm_pallas.2} parent=47 // pred_region
        %p540 = scmp.lt.s32.totalorder %s22, 1
        %s541 = scalar_select %p540, %s22, 1
        %s542 = smul.addr %s541, 8
        %s543 = scalar_lea.vmem %s3, %s542
      $region56: #{instance_norm_pallas.2} parent=47 // pred_fallthru
        _
      // Predicated region
      $region57: #{instance_norm_pallas.2} parent=47 // pred_check
        %p544 = pneg %p164
      $region58: #{instance_norm_pallas.2} parent=47 // pred_check_branch
        %546 = sbr.rel (%p544) target = $region60
      $region59: #{instance_norm_pallas.2} parent=47 // pred_region
        %p547 = scmp.lt.s32.totalorder %s22, 1
        %s548 = scalar_select %p547, %s22, 1
        %s549 = scalar_lea.vmem %s4, %s548
      $region60: #{instance_norm_pallas.2} parent=47 // pred_fallthru
        _
    $region48: #{instance_norm_pallas.2} parent=5 // pred_fallthru
      _
  $region6: #{instance_norm_pallas.2} parent=0 // loop_footer
    %s15 = sadd.s32 1, %s11
  $region7: #{instance_norm_pallas.2} parent=0 // loop_footer_branch
    %10 = sbr.rel target = $region3
  $region8: #{instance_norm_pallas.2} parent=0 // loop_exit
    _

// kernel: instance_norm_pallas.3
$region0: #{instance_norm_pallas.3}
  #allocation0 [shape = 'u32[]', space=smem, size = 0x4, offset = 0x4, fixed_abs, tag = 'smem constant byte address 0x4 - core index']
  #allocation1 [shape = 'u32[144,128]{1,0:T(1,128)}', space=vmem, size = 0x12000, scoped, tag = 'internal scratch']
  %s0 = inlined_call_operand.vmem [shape: f32[64,23], index: 0, kind: input, shape index: {}]
  %s1 = inlined_call_operand.vmem [shape: s32[64,1], index: 1, kind: input, shape index: {}]
  %s2 = inlined_call_operand.vmem [shape: f32[8,23], index: 2, kind: input, shape index: {}]
  %s3 = inlined_call_operand.vmem [shape: f32[8,23], index: 3, kind: input, shape index: {}]
  %s4 = inlined_call_operand.vmem [shape: f32[64,23], index: 4, kind: output, shape index: {}]
  %s5 = sld [smem:[#allocation0]]
  $region49: #{instance_norm_pallas.3} parent=0
    _
  %s7 = ssub.s32 1, %s5
  %s8 = scalar_select 0, %s7, %s5
  loop: start=0, step=1, limit=6
  $region2: #{instance_norm_pallas.3} parent=0 // loop_pre_header
    _
  $region3: #{instance_norm_pallas.3} parent=0 // loop_header
    %s10 = sphi 0, %s14
    %p11 = scmp.ge.s32.totalorder %s10, 6
    %s20 = sphi 0, %s22
    %s23 = sphi 0, %s20
    %s24 = sphi 0, %s23
    %s40 = sphi 0, %s24
    %s46 = sphi 0, %s48
    %s49 = sphi 0, %s46
    %s50 = sphi 0, %s49
    %s66 = sphi 0, %s50
    %s70 = sphi 0, %s70
    %s72 = sphi 0, %s70
    %s73 = sphi 0, %s72
    %s87 = sphi 0, %s73
    %s91 = sphi 0, %s91
    %s93 = sphi 0, %s91
    %s94 = sphi 0, %s93
    %s108 = sphi 0, %s94
    %s114 = sphi 0, %s116
    %s117 = sphi 0, %s114
    %s118 = sphi 0, %s117
    %s134 = sphi 0, %s118
  $region4: #{instance_norm_pallas.3} parent=0 // loop_header_branch
    %13 = sbr.rel (%p11) target = $region8
  $region5: #{instance_norm_pallas.3} parent=0 // loop_body
    %s15 = ssub.s32 %s10, 1
    %s16 = ssub.s32 %s10, 2
    %s17 = sadd.s32 %s10, 1
    %s18 = ssub.s32 %s10, %s17
    %p19 = scmp.eq.s32.totalorder %s18, 0
    %s21 = sadd.s32 %s20, 1
    %s22 = scalar_select %p19, %s20, %s21
    %p25 = pneg %p19
    %p26 = scmp.eq.s32.totalorder %s10, 3
    %p27 = por %p25, %p26
    %p28 = scmp.ne.s32.totalorder %s20, %s23
    %p29 = scmp.eq.s32.totalorder %s10, 0
    %p30 = por %p28, %p29
    %p31 = scmp.ne.s32.totalorder %s20, %s23
    %p32 = scmp.eq.s32.totalorder %s15, 3
    %p33 = por %p31, %p32
    %p34 = scmp.ne.s32.totalorder %s23, %s24
    %p35 = scmp.eq.s32.totalorder %s15, 0
    %p36 = por %p34, %p35
    %p37 = scmp.ne.s32.totalorder %s23, %s24
    %p38 = scmp.eq.s32.totalorder %s16, 3
    %p39 = por %p37, %p38
    %p41 = scmp.ne.s32.totalorder %s24, %s40
    %p42 = scmp.eq.s32.totalorder %s16, 0
    %p43 = por %p41, %p42
    %s44 = ssub.s32 %s10, %s17
    %p45 = scmp.eq.s32.totalorder %s44, 0
    %s47 = sadd.s32 %s46, 1
    %s48 = scalar_select %p45, %s46, %s47
    %p51 = pneg %p45
    %p52 = scmp.eq.s32.totalorder %s10, 3
    %p53 = por %p51, %p52
    %p54 = scmp.ne.s32.totalorder %s46, %s49
    %p55 = scmp.eq.s32.totalorder %s10, 0
    %p56 = por %p54, %p55
    %p57 = scmp.ne.s32.totalorder %s46, %s49
    %p58 = scmp.eq.s32.totalorder %s15, 3
    %p59 = por %p57, %p58
    %p60 = scmp.ne.s32.totalorder %s49, %s50
    %p61 = scmp.eq.s32.totalorder %s15, 0
    %p62 = por %p60, %p61
    %p63 = scmp.ne.s32.totalorder %s49, %s50
    %p64 = scmp.eq.s32.totalorder %s16, 3
    %p65 = por %p63, %p64
    %p67 = scmp.ne.s32.totalorder %s50, %s66
    %p68 = scmp.eq.s32.totalorder %s16, 0
    %p69 = por %p67, %p68
    %s71 = sadd.s32 %s70, 1
    %p74 = scmp.eq.s32.totalorder %s10, 3
    %p75 = scmp.ne.s32.totalorder %s70, %s72
    %p76 = scmp.eq.s32.totalorder %s10, 0
    %p77 = por %p75, %p76
    %p78 = scmp.ne.s32.totalorder %s70, %s72
    %p79 = scmp.eq.s32.totalorder %s15, 3
    %p80 = por %p78, %p79
    %p81 = scmp.ne.s32.totalorder %s72, %s73
    %p82 = scmp.eq.s32.totalorder %s15, 0
    %p83 = por %p81, %p82
    %p84 = scmp.ne.s32.totalorder %s72, %s73
    %p85 = scmp.eq.s32.totalorder %s16, 3
    %p86 = por %p84, %p85
    %p88 = scmp.ne.s32.totalorder %s73, %s87
    %p89 = scmp.eq.s32.totalorder %s16, 0
    %p90 = por %p88, %p89
    %s92 = sadd.s32 %s91, 1
    %p95 = scmp.eq.s32.totalorder %s10, 3
    %p96 = scmp.ne.s32.totalorder %s91, %s93
    %p97 = scmp.eq.s32.totalorder %s10, 0
    %p98 = por %p96, %p97
    %p99 = scmp.ne.s32.totalorder %s91, %s93
    %p100 = scmp.eq.s32.totalorder %s15, 3
    %p101 = por %p99, %p100
    %p102 = scmp.ne.s32.totalorder %s93, %s94
    %p103 = scmp.eq.s32.totalorder %s15, 0
    %p104 = por %p102, %p103
    %p105 = scmp.ne.s32.totalorder %s93, %s94
    %p106 = scmp.eq.s32.totalorder %s16, 3
    %p107 = por %p105, %p106
    %p109 = scmp.ne.s32.totalorder %s94, %s108
    %p110 = scmp.eq.s32.totalorder %s16, 0
    %p111 = por %p109, %p110
    %s112 = ssub.s32 %s10, %s17
    %p113 = scmp.eq.s32.totalorder %s112, 0
    %s115 = sadd.s32 %s114, 1
    %s116 = scalar_select %p113, %s114, %s115
    %p119 = pneg %p113
    %p120 = scmp.eq.s32.totalorder %s10, 3
    %p121 = por %p119, %p120
    %p122 = scmp.ne.s32.totalorder %s114, %s117
    %p123 = scmp.eq.s32.totalorder %s10, 0
    %p124 = por %p122, %p123
    %p125 = scmp.ne.s32.totalorder %s114, %s117
    %p126 = scmp.eq.s32.totalorder %s15, 3
    %p127 = por %p125, %p126
    %p128 = scmp.ne.s32.totalorder %s117, %s118
    %p129 = scmp.eq.s32.totalorder %s15, 0
    %p130 = por %p128, %p129
    %p131 = scmp.ne.s32.totalorder %s117, %s118
    %p132 = scmp.eq.s32.totalorder %s16, 3
    %p133 = por %p131, %p132
    %p135 = scmp.ne.s32.totalorder %s118, %s134
    %p136 = scmp.eq.s32.totalorder %s16, 0
    %p137 = por %p135, %p136
    %p138 = scmp.le.s32.totalorder 1, %s10
    %p139 = scmp.lt.s32.totalorder %s10, 5
    %p140 = pnand %p138, %p139
    %p141 = pneg %p140
    // Predicated region
    $region9: #{instance_norm_pallas.3} parent=5 // pred_check
      _
    $region10: #{instance_norm_pallas.3} parent=5 // pred_check_branch
      %143 = sbr.rel (%p140) target = $region12
    $region11: #{instance_norm_pallas.3} parent=5 // pred_region
      %s144 = ssub.s32 %s10, 1
      // Predicated region
      $region13: #{instance_norm_pallas.3} parent=11 // pred_check
        %p145 = pneg %p83
      $region14: #{instance_norm_pallas.3} parent=11 // pred_check_branch
        %147 = sbr.rel (%p145) target = $region16
      $region15: #{instance_norm_pallas.3} parent=11 // pred_region
        _
      $region16: #{instance_norm_pallas.3} parent=11 // pred_fallthru
        _
      // Predicated region
      $region17: #{instance_norm_pallas.3} parent=11 // pred_check
        %p148 = pneg %p104
      $region18: #{instance_norm_pallas.3} parent=11 // pred_check_branch
        %150 = sbr.rel (%p148) target = $region20
      $region19: #{instance_norm_pallas.3} parent=11 // pred_region
        _
      $region20: #{instance_norm_pallas.3} parent=11 // pred_fallthru
        _
    $region12: #{instance_norm_pallas.3} parent=5 // pred_fallthru
      _
    %p151 = scmp.lt.s32.totalorder %s10, 4
    // Predicated region
    $region21: #{instance_norm_pallas.3} parent=5 // pred_check
      %p152 = pneg %p151
    $region22: #{instance_norm_pallas.3} parent=5 // pred_check_branch
      %154 = sbr.rel (%p152) target = $region24
    $region23: #{instance_norm_pallas.3} parent=5 // pred_region
      // Predicated region
      $region25: #{instance_norm_pallas.3} parent=23 // pred_check
        %p155 = pneg %p30
      $region26: #{instance_norm_pallas.3} parent=23 // pred_check_branch
        %157 = sbr.rel (%p155) target = $region28
      $region27: #{instance_norm_pallas.3} parent=23 // pred_region
        %s158 = smul.u32 2, %s10
        %p159 = scmp.lt.s32.totalorder %s158, 7
        %s160 = scalar_select %p159, %s158, 7
        %s161 = smul.addr %s160, 8
        %s162 = scalar_lea.vmem %s0, %s161
        %s163 = smul.u32 2, %s10
      $region28: #{instance_norm_pallas.3} parent=23 // pred_fallthru
        _
      // Predicated region
      $region29: #{instance_norm_pallas.3} parent=23 // pred_check
        %p164 = pneg %p56
      $region30: #{instance_norm_pallas.3} parent=23 // pred_check_branch
        %166 = sbr.rel (%p164) target = $region32
      $region31: #{instance_norm_pallas.3} parent=23 // pred_region
        %s167 = smul.u32 2, %s10
        %p168 = scmp.lt.s32.totalorder %s167, 7
        %s169 = scalar_select %p168, %s167, 7
        %s170 = smul.addr %s169, 8
        %s171 = scalar_lea.vmem %s1, %s170
        %s172 = smul.u32 2, %s10
      $region32: #{instance_norm_pallas.3} parent=23 // pred_fallthru
        _
    $region24: #{instance_norm_pallas.3} parent=5 // pred_fallthru
      _
    %p173 = scmp.le.s32.totalorder 1, %s10
    %p174 = scmp.lt.s32.totalorder %s10, 5
    %p175 = pnand %p173, %p174
    %p176 = pneg %p175
    // Predicated region
    $region33: #{instance_norm_pallas.3} parent=5 // pred_check
      _
    $region34: #{instance_norm_pallas.3} parent=5 // pred_check_branch
      %178 = sbr.rel (%p175) target = $region36
    $region35: #{instance_norm_pallas.3} parent=5 // pred_region
      %s179 = ssub.s32 %s10, 1
      %s180 = smul.u32 2, %s15
      %p181 = scmp.lt.s32.totalorder %s180, 7
      %s182 = scalar_select %p181, %s180, 7
      %s183 = smul.addr %s182, 8
      %s184 = scalar_lea.vmem %s0, %s183
      %p185 = pneg %p36
      %p186 = pneg %p33
      %s187 = smul.u32 2, %s15
      %p188 = scmp.lt.s32.totalorder %s187, 7
      %s189 = scalar_select %p188, %s187, 7
      %s190 = smul.addr %s189, 8
      %s191 = scalar_lea.vmem %s1, %s190
      %p192 = pneg %p62
      %p193 = pneg %p59
      %p194 = pneg %p83
      %p195 = pneg %p80
      %p196 = pneg %p104
      %p197 = pneg %p101
      %p198 = pneg %p130
      %p199 = pneg %p127
      %s200 = smul.u32 2, %s15
      %p201 = scmp.lt.s32.totalorder %s200, 7
      %s202 = scalar_select %p201, %s200, 7
      %s203 = smul.addr %s202, 8
      %s204 = scalar_lea.vmem %s4, %s203
      %s205 = smul.u32 2, %s15
      %p206 = scmp.lt.s32.totalorder %s205, 7
      %s207 = scalar_select %p206, %s205, 7
      %s208 = smul.addr %s207, 8
      %s209 = scalar_lea.vmem %s0, %s208
      %s210 = smul.u32 2, %s15
      %s211 = smul.u32 2, %s15
      %p212 = scmp.lt.s32.totalorder %s211, 7
      %s213 = scalar_select %p212, %s211, 7
      %s214 = smul.addr %s213, 8
      %s215 = scalar_lea.vmem %s1, %s214
      %s216 = smul.u32 2, %s15
      %s217 = smul.u32 2, %s15
      %p218 = scmp.lt.s32.totalorder %s217, 7
      %s219 = scalar_select %p218, %s217, 7
      %s220 = smul.addr %s219, 8
      %s221 = scalar_lea.vmem %s4, %s220
      %s222 = smul.u32 2, %s15
      %v223 = vld [vmem:[%s209] sm:$0xff]
      %v224 = vld [vmem:[%s209 + $0x8] sm:$0xff]
      %v225 = vld [vmem:[%s215] sm:$0xff]
      %v226 = vld [vmem:[%s215 + $0x8] sm:$0xff]
      %v227 = vlaneseq
      %v228 = vand.u32 %v227, 127
      %229 = vset.pattern.permute.xlu0 0
      %230 = vperm.xlu0 %229, %v225
      %v231 = vpop.permute.xlu0 %230
      %232 = vset.pattern.permute.xlu0 0
      %233 = vperm.xlu0 %232, %v226
      %v234 = vpop.permute.xlu0 %233
      %vm235 = vcmp.eq.s32.totalorder %v228, %v231
      %vm236 = vcmp.eq.s32.totalorder %v228, %v234
      %v237 = vsel %vm235, 1, 0
      %v238 = vsel %vm236, 1, 0
      %v239 = vcvt.s32.f32 %v237
      %v240 = vcvt.s32.f32 %v238
      %v241 = vld [vmem:[%s2] sm:$0xff]
      %vm242 = vcmask 64512
      %v244 = vsel %vm242, %v239, 0
      %v247 = vsel %vm242, %v240, 0
      %249 = vmatprep.subr.mxu0 0.0
      %250 = vmatpush1.msra.mxu0 %v241
      %251 = vmatprep.subr.mxu0 0.0
      %252 = vmatpush1.msra.mxu0 0.0
      %253 = vmatprep.subr.mxu0 0.0
      %254 = vmatpush1.msra.mxu0 0.0
      %255 = vmatprep.subr.mxu0 0.0
      %256 = vmatpush1.msra.mxu0 0.0
      %257 = vmatprep.subr.mxu0 0.0
      %258 = vmatpush1.msra.mxu0 0.0
      %259 = vmatprep.subr.mxu0 0.0
      %260 = vmatpush1.msra.mxu0 0.0
      %261 = vmatprep.subr.mxu0 0.0
      %262 = vmatpush1.msra.mxu0 0.0
      %263 = vmatprep.subr.mxu0 0.0
      %264 = vmatpush1.msra.mxu0 0.0
      %265 = vmatprep.subr.mxu0 0.0
      %266 = vmatpush1.msra.mxu0 0.0
      %267 = vmatprep.subr.mxu0 0.0
      %268 = vmatpush1.msra.mxu0 0.0
      %269 = vmatprep.subr.mxu0 0.0
      %270 = vmatpush1.msra.mxu0 0.0
      %271 = vmatprep.subr.mxu0 0.0
      %272 = vmatpush1.msra.mxu0 0.0
      %273 = vmatprep.subr.mxu0 0.0
      %274 = vmatpush1.msra.mxu0 0.0
      %275 = vmatprep.subr.mxu0 0.0
      %276 = vmatpush1.msra.mxu0 0.0
      %277 = vmatprep.subr.mxu0 0.0
      %278 = vmatpush1.msra.mxu0 0.0
      %279 = vmatprep.subr.mxu0 0.0
      %280 = vmatpush1.msra.mxu0 0.0
      %281 = vmatprep.subr.mxu0 0.0
      %282 = vmatpush1.msra.mxu0 0.0
      %283 = vmatprep.subr.mxu0 0.0
      %284 = vmatpush1.msra.mxu0 0.0
      %285 = vmatprep.subr.mxu0 0.0
      %286 = vmatpush1.msra.mxu0 0.0
      %287 = vmatprep.subr.mxu0 0.0
      %288 = vmatpush1.msra.mxu0 0.0
      %289 = vmatprep.subr.mxu0 0.0
      %290 = vmatpush1.msra.mxu0 0.0
      %291 = vmatprep.subr.mxu0 0.0
      %292 = vmatpush1.msra.mxu0 0.0
      %293 = vmatprep.subr.mxu0 0.0
      %294 = vmatpush1.msra.mxu0 0.0
      %295 = vmatprep.subr.mxu0 0.0
      %296 = vmatpush1.msra.mxu0 0.0
      %297 = vmatprep.subr.mxu0 0.0
      %298 = vmatpush1.msra.mxu0 0.0
      %299 = vmatprep.subr.mxu0 0.0
      %300 = vmatpush1.msra.mxu0 0.0
      %301 = vmatprep.subr.mxu0 0.0
      %302 = vmatpush1.msra.mxu0 0.0
      %303 = vmatprep.subr.mxu0 0.0
      %304 = vmatpush1.msra.mxu0 0.0
      %305 = vmatprep.subr.mxu0 0.0
      %306 = vmatpush1.msra.mxu0 0.0
      %307 = vmatprep.subr.mxu0 0.0
      %308 = vmatpush1.msra.mxu0 0.0
      %309 = vmatprep.subr.mxu0 0.0
      %310 = vmatpush1.msra.mxu0 0.0
      %311 = vmatprep.subr.mxu0 0.0
      %312 = vmatpush1.msra.mxu0 0.0
      %313 = vmatprep.mubr.f32.mxu0 0.0
      %314 = vmatmul.mubr.f32.gmra.mrb[0].mxu0 %v244
      %v315 = vpop.f32.mrb[0].mxu0
      %v316 = vadd.f32 0.0, %v315
      %v317 = vpop.f32.mrb[0].mxu0
      %318 = vmatprep.mubr.f32.mxu0 0.0
      %319 = vmatmul.mubr.f32.gmra.mrb[0].mxu0 %v247
      %v320 = vpop.f32.mrb[0].mxu0
      %v321 = vadd.f32 0.0, %v320
      %v322 = vpop.f32.mrb[0].mxu0
      %323 = vdwg.mxu0
      %v324 = vld [vmem:[%s3] sm:$0xff]
      %325 = vmatprep.subr.mxu0 0.0
      %326 = vmatpush1.msra.mxu0 %v324
      %327 = vmatprep.subr.mxu0 0.0
      %328 = vmatpush1.msra.mxu0 0.0
      %329 = vmatprep.subr.mxu0 0.0
      %330 = vmatpush1.msra.mxu0 0.0
      %331 = vmatprep.subr.mxu0 0.0
      %332 = vmatpush1.msra.mxu0 0.0
      %333 = vmatprep.subr.mxu0 0.0
      %334 = vmatpush1.msra.mxu0 0.0
      %335 = vmatprep.subr.mxu0 0.0
      %336 = vmatpush1.msra.mxu0 0.0
      %337 = vmatprep.subr.mxu0 0.0
      %338 = vmatpush1.msra.mxu0 0.0
      %339 = vmatprep.subr.mxu0 0.0
      %340 = vmatpush1.msra.mxu0 0.0
      %341 = vmatprep.subr.mxu0 0.0
      %342 = vmatpush1.msra.mxu0 0.0
      %343 = vmatprep.subr.mxu0 0.0
      %344 = vmatpush1.msra.mxu0 0.0
      %345 = vmatprep.subr.mxu0 0.0
      %346 = vmatpush1.msra.mxu0 0.0
      %347 = vmatprep.subr.mxu0 0.0
      %348 = vmatpush1.msra.mxu0 0.0
      %349 = vmatprep.subr.mxu0 0.0
      %350 = vmatpush1.msra.mxu0 0.0
      %351 = vmatprep.subr.mxu0 0.0
      %352 = vmatpush1.msra.mxu0 0.0
      %353 = vmatprep.subr.mxu0 0.0
      %354 = vmatpush1.msra.mxu0 0.0
      %355 = vmatprep.subr.mxu0 0.0
      %356 = vmatpush1.msra.mxu0 0.0
      %357 = vmatprep.subr.mxu0 0.0
      %358 = vmatpush1.msra.mxu0 0.0
      %359 = vmatprep.subr.mxu0 0.0
      %360 = vmatpush1.msra.mxu0 0.0
      %361 = vmatprep.subr.mxu0 0.0
      %362 = vmatpush1.msra.mxu0 0.0
      %363 = vmatprep.subr.mxu0 0.0
      %364 = vmatpush1.msra.mxu0 0.0
      %365 = vmatprep.subr.mxu0 0.0
      %366 = vmatpush1.msra.mxu0 0.0
      %367 = vmatprep.subr.mxu0 0.0
      %368 = vmatpush1.msra.mxu0 0.0
      %369 = vmatprep.subr.mxu0 0.0
      %370 = vmatpush1.msra.mxu0 0.0
      %371 = vmatprep.subr.mxu0 0.0
      %372 = vmatpush1.msra.mxu0 0.0
      %373 = vmatprep.subr.mxu0 0.0
      %374 = vmatpush1.msra.mxu0 0.0
      %375 = vmatprep.subr.mxu0 0.0
      %376 = vmatpush1.msra.mxu0 0.0
      %377 = vmatprep.subr.mxu0 0.0
      %378 = vmatpush1.msra.mxu0 0.0
      %379 = vmatprep.subr.mxu0 0.0
      %380 = vmatpush1.msra.mxu0 0.0
      %381 = vmatprep.subr.mxu0 0.0
      %382 = vmatpush1.msra.mxu0 0.0
      %383 = vmatprep.subr.mxu0 0.0
      %384 = vmatpush1.msra.mxu0 0.0
      %385 = vmatprep.subr.mxu0 0.0
      %386 = vmatpush1.msra.mxu0 0.0
      %387 = vmatprep.subr.mxu0 0.0
      %388 = vmatpush1.msra.mxu0 0.0
      %389 = vmatprep.mubr.f32.mxu0 0.0
      %390 = vmatmul.mubr.f32.gmra.mrb[0].mxu0 %v244
      %v391 = vpop.f32.mrb[0].mxu0
      %v392 = vadd.f32 0.0, %v391
      %v393 = vpop.f32.mrb[0].mxu0
      %394 = vmatprep.mubr.f32.mxu0 0.0
      %395 = vmatmul.mubr.f32.gmra.mrb[0].mxu0 %v247
      %v396 = vpop.f32.mrb[0].mxu0
      %v397 = vadd.f32 0.0, %v396
      %v398 = vpop.f32.mrb[0].mxu0
      %399 = vdwg.mxu0
      %v400 = vmul.f32 %v223, %v316
      %v401 = vmul.f32 %v224, %v321
      %v402 = vadd.f32 %v400, %v392
      %v403 = vadd.f32 %v401, %v397
      %vm404 = vcmask 187392
      %405 = vst.msk [vmem:[%s221] sm:$0xff] %vm404, %v402
      %406 = vst.msk [vmem:[%s221 + $0x8] sm:$0xff] %vm404, %v403
      %s407 = smul.u32 2, %s15
      %p408 = scmp.lt.s32.totalorder %s407, 7
      %s409 = scalar_select %p408, %s407, 7
      %s410 = smul.addr %s409, 8
      %s411 = scalar_lea.vmem %s4, %s410
      // Predicated region
      $region37: #{instance_norm_pallas.3} parent=35 // pred_check
        %p412 = pneg %p127
      $region38: #{instance_norm_pallas.3} parent=35 // pred_check_branch
        %414 = sbr.rel (%p412) target = $region40
      $region39: #{instance_norm_pallas.3} parent=35 // pred_region
        %s415 = smul.u32 2, %s15
      $region40: #{instance_norm_pallas.3} parent=35 // pred_fallthru
        _
    $region36: #{instance_norm_pallas.3} parent=5 // pred_fallthru
      _
    %p416 = scmp.le.s32.totalorder 2, %s10
    // Predicated region
    $region41: #{instance_norm_pallas.3} parent=5 // pred_check
      %p417 = pneg %p416
    $region42: #{instance_norm_pallas.3} parent=5 // pred_check_branch
      %419 = sbr.rel (%p417) target = $region44
    $region43: #{instance_norm_pallas.3} parent=5 // pred_region
      %s420 = ssub.s32 %s10, 2
      // Predicated region
      $region45: #{instance_norm_pallas.3} parent=43 // pred_check
        %p421 = pneg %p133
      $region46: #{instance_norm_pallas.3} parent=43 // pred_check_branch
        %423 = sbr.rel (%p421) target = $region48
      $region47: #{instance_norm_pallas.3} parent=43 // pred_region
        %s424 = smul.u32 2, %s16
        %p425 = scmp.lt.s32.totalorder %s424, 7
        %s426 = scalar_select %p425, %s424, 7
        %s427 = smul.addr %s426, 8
        %s428 = scalar_lea.vmem %s4, %s427
      $region48: #{instance_norm_pallas.3} parent=43 // pred_fallthru
        _
    $region44: #{instance_norm_pallas.3} parent=5 // pred_fallthru
      _
  $region6: #{instance_norm_pallas.3} parent=0 // loop_footer
    %s14 = sadd.s32 1, %s10
  $region7: #{instance_norm_pallas.3} parent=0 // loop_footer_branch
    %9 = sbr.rel target = $region3
  $region8: #{instance_norm_pallas.3} parent=0 // loop_exit
    _

</llo_original>
